<compile_context>
chip_gen: v5e
topology: v5e:2x2
jax: 0.10.0
libtpu: 0.0.40
codegen_flags: <defaults>
</compile_context>

<pallas_src>
import jax
import jax.numpy as jnp
from jax.experimental import pallas as pl
from jax.experimental.pallas import tpu as pltpu


def _target_value_kernel(a_ref, b_ref, w1_ref, b1_ref, w2_ref, b2_ref, y_ref,
                         scores_ref, loss_ref):
    D = a_ref.shape[1]  # static

    # fc1 as split-K: two small MXU pushes instead of concat + one push.
    h = (jnp.dot(a_ref[...], w1_ref[:D, :], preferred_element_type=jnp.float32)
         + jnp.dot(b_ref[...], w1_ref[D:, :], preferred_element_type=jnp.float32)
         + b1_ref[...])                                             # (B, F)

    # fc2 on the VPU/XLU: lane-dense (1, F) weight, broadcast multiply then
    # cross-lane reduce; bias comes off the scalar path (SMEM).
    out = jnp.sum(h * w2_ref[...], axis=-1, keepdims=True) + b2_ref[0, 0]  # (B, 1)
    scores_ref[...] = out

    # loss = sqrt(mean((out - labels)^2)); scalar result -> SMEM output.
    diff = out - y_ref[...]
    loss_ref[0, 0] = jnp.sqrt(jnp.mean(diff * diff))


def prepare_params(w1, b1, w2, b2):
    """One-time parameter preprocessing, hoisted out of the per-call path.

    PyTorch nn.Linear layout in: w1 (F, 2D), b1 (F,), w2 (1, F), b2 (1,).
    Out: w1_t (2D, F), b1_r (1, F), w2_r (1, F) [lane-dense, NOT transposed],
         b2_r (1, 1) [SMEM scalar].
    """
    F = w1.shape[0]
    w1_t = jnp.asarray(w1, jnp.float32).T                 # (2D, F)
    b1_r = jnp.asarray(b1, jnp.float32).reshape(1, F)     # (1, F)
    w2_r = jnp.asarray(w2, jnp.float32).reshape(1, F)     # (1, F) lane-dense
    b2_r = jnp.asarray(b2, jnp.float32).reshape(1, 1)     # (1, 1) scalar
    return w1_t, b1_r, w2_r, b2_r


@jax.jit
def target_value_forward(inputs_embeds, decoder_inputs_embeds, labels,
                         w1_t, b1_r, w2_r, b2_r):
    """inputs_embeds / decoder_inputs_embeds: (B, D) f32; labels: (B, 1) f32.
    Weights must already be preprocessed by prepare_params()."""
    B, _ = inputs_embeds.shape

    vmem = pl.BlockSpec(memory_space=pltpu.MemorySpace.VMEM)
    smem = pl.BlockSpec(memory_space=pltpu.MemorySpace.SMEM)

    scores, loss = pl.pallas_call(
        _target_value_kernel,
        out_shape=(jax.ShapeDtypeStruct((B, 1), jnp.float32),   # scores
                   jax.ShapeDtypeStruct((1, 1), jnp.float32)),  # loss (scalar)
        in_specs=[vmem,   # inputs_embeds (B, D)
                  vmem,   # decoder_inputs_embeds (B, D)
                  vmem,   # w1_t (2D, F)
                  vmem,   # b1_r (1, F)
                  vmem,   # w2_r (1, F)
                  smem,   # b2_r (1, 1)  -> scalar path
                  vmem],  # labels (B, 1)
        out_specs=(vmem, smem),
    )(inputs_embeds, decoder_inputs_embeds, w1_t, b1_r, w2_r, b2_r, labels)
    return loss[0, 0], scores


def _reference(a, b, labels, w1, b1, w2, b2):
    x = jnp.concatenate([a, b], axis=1)
    h = x @ w1.T + b1
    out = h @ w2.T + b2
    loss = jnp.sqrt(jnp.mean((out - labels) ** 2))
    return loss, out


if __name__ == "__main__":
    key = jax.random.PRNGKey(0)
    B = 8          # batch
    D = 32         # config.d_model
    F = 128        # config.ffn_dim

    k = jax.random.split(key, 7)
    inputs_embeds = jax.random.normal(k[0], (B, D), jnp.float32)
    decoder_inputs_embeds = jax.random.normal(k[1], (B, D), jnp.float32)
    labels = jax.random.normal(k[2], (B, 1), jnp.float32)

    # PyTorch nn.Linear shapes: weight = (out, in), bias = (out,)
    w1 = 0.05 * jax.random.normal(k[3], (F, 2 * D), jnp.float32)
    b1 = 0.05 * jax.random.normal(k[4], (F,), jnp.float32)
    w2 = 0.05 * jax.random.normal(k[5], (1, F), jnp.float32)
    b2 = 0.05 * jax.random.normal(k[6], (1,), jnp.float32)

    # One-time parameter prep (not on the per-forward path).
    params = prepare_params(w1, b1, w2, b2)

    loss, scores = target_value_forward(inputs_embeds, decoder_inputs_embeds,
                                        labels, *params)
    jax.block_until_ready((loss, scores))

    ref_loss, ref_scores = _reference(inputs_embeds, decoder_inputs_embeds,
                                      labels, w1, b1, w2, b2)
    assert jnp.allclose(scores, ref_scores, atol=1e-4, rtol=1e-4)
    assert jnp.allclose(loss, ref_loss, atol=1e-5, rtol=1e-5)
    print("KERNEL_OK")
</pallas_src>

<mosaic_0001>
module attributes {stable_mosaic.version = 11 : i64} {
  func.func @_target_value_kernel(%arg0: memref<8x32xf32, #tpu.memory_space<vmem>>, %arg1: memref<8x32xf32, #tpu.memory_space<vmem>>, %arg2: memref<64x128xf32, #tpu.memory_space<vmem>>, %arg3: memref<1x128xf32, #tpu.memory_space<vmem>>, %arg4: memref<1x128xf32, #tpu.memory_space<vmem>>, %arg5: memref<1x1xf32, #tpu.memory_space<smem>>, %arg6: memref<8x1xf32, #tpu.memory_space<vmem>>, %arg7: memref<8x1xf32, #tpu.memory_space<vmem>>, %arg8: memref<1x1xf32, #tpu.memory_space<smem>>) attributes {dimension_semantics = [], scalar_prefetch = 0 : i64, scratch_operands = 0 : i64, tpu.core_type = #tpu.core_type<tc>} {
    %c0 = arith.constant 0 : index
    %c0_0 = arith.constant 0 : index
    %0 = vector.load %arg0[%c0, %c0_0] : memref<8x32xf32, #tpu.memory_space<vmem>>, vector<8x32xf32>
    %c0_1 = arith.constant 0 : index
    %c0_2 = arith.constant 0 : index
    %1 = vector.load %arg2[%c0_1, %c0_2] : memref<64x128xf32, #tpu.memory_space<vmem>>, vector<32x128xf32>
    %cst = arith.constant dense<0.000000e+00> : vector<8x128xf32>
    %2 = tpu.matmul %0, %1, %cst {dimension_numbers = #tpu.dot_dimension_numbers<[1], [0], [0], [1], [0, 0, 1, 1], [], []>} : vector<8x32xf32>, vector<32x128xf32>, vector<8x128xf32> -> vector<8x128xf32>
    %c0_3 = arith.constant 0 : index
    %c0_4 = arith.constant 0 : index
    %3 = vector.load %arg1[%c0_3, %c0_4] : memref<8x32xf32, #tpu.memory_space<vmem>>, vector<8x32xf32>
    %c32 = arith.constant 32 : index
    %c0_5 = arith.constant 0 : index
    %4 = vector.load %arg2[%c32, %c0_5] : memref<64x128xf32, #tpu.memory_space<vmem>>, vector<32x128xf32>
    %cst_6 = arith.constant dense<0.000000e+00> : vector<8x128xf32>
    %5 = tpu.matmul %3, %4, %cst_6 {dimension_numbers = #tpu.dot_dimension_numbers<[1], [0], [0], [1], [0, 0, 1, 1], [], []>} : vector<8x32xf32>, vector<32x128xf32>, vector<8x128xf32> -> vector<8x128xf32>
    %6 = arith.addf %2, %5 : vector<8x128xf32>
    %c0_7 = arith.constant 0 : index
    %c0_8 = arith.constant 0 : index
    %7 = vector.load %arg3[%c0_7, %c0_8] : memref<1x128xf32, #tpu.memory_space<vmem>>, vector<1x128xf32>
    %8 = vector.broadcast %7 : vector<1x128xf32> to vector<8x128xf32>
    %9 = arith.addf %6, %8 : vector<8x128xf32>
    %c0_9 = arith.constant 0 : index
    %c0_10 = arith.constant 0 : index
    %10 = vector.load %arg4[%c0_9, %c0_10] : memref<1x128xf32, #tpu.memory_space<vmem>>, vector<1x128xf32>
    %11 = vector.broadcast %10 : vector<1x128xf32> to vector<8x128xf32>
    %12 = arith.mulf %9, %11 : vector<8x128xf32>
    %cst_11 = arith.constant dense<0.000000e+00> : vector<8xf32>
    %13 = vector.multi_reduction <add>, %12, %cst_11 [1] : vector<8x128xf32> to vector<8xf32>
    %14 = vector.shape_cast %13 : vector<8xf32> to vector<8x1xf32>
    %c0_12 = arith.constant 0 : index
    %c0_13 = arith.constant 0 : index
    %15 = memref.load %arg5[%c0_12, %c0_13] : memref<1x1xf32, #tpu.memory_space<smem>>
    %16 = vector.broadcast %15 : f32 to vector<8x1xf32>
    %17 = arith.addf %14, %16 : vector<8x1xf32>
    %c0_14 = arith.constant 0 : index
    %c0_15 = arith.constant 0 : index
    %18 = vector.load %arg7[%c0_14, %c0_15] : memref<8x1xf32, #tpu.memory_space<vmem>>, vector<8x1xf32>
    tpu.vector_store %arg7[%c0_14, %c0_15], %17 {strides = array<i32>} : memref<8x1xf32, #tpu.memory_space<vmem>>, vector<8x1xf32>,
    %c0_16 = arith.constant 0 : index
    %c0_17 = arith.constant 0 : index
    %19 = vector.load %arg6[%c0_16, %c0_17] : memref<8x1xf32, #tpu.memory_space<vmem>>, vector<8x1xf32>
    %20 = arith.subf %17, %19 : vector<8x1xf32>
    %21 = arith.mulf %20, %20 : vector<8x1xf32>
    %22 = vector.shape_cast %21 : vector<8x1xf32> to vector<1x8x1xf32>
    %cst_18 = arith.constant dense<0.000000e+00> : vector<1xf32>
    %23 = vector.multi_reduction <add>, %22, %cst_18 [1, 2] : vector<1x8x1xf32> to vector<1xf32>
    %24 = vector.shape_cast %23 : vector<1xf32> to vector<1x1x1xf32>
    %25 = vector.extract %24[0, 0, 0] : f32 from vector<1x1x1xf32>
    %cst_19 = arith.constant 8.000000e+00 : f32
    %26 = arith.divf %25, %cst_19 : f32
    %27 = math.sqrt %26 : f32
    %c0_20 = arith.constant 0 : index
    %c0_21 = arith.constant 0 : index
    %28 = memref.load %arg8[%c0_20, %c0_21] : memref<1x1xf32, #tpu.memory_space<smem>>
    memref.store %27, %arg8[%c0_20, %c0_21] : memref<1x1xf32, #tpu.memory_space<smem>>
    return
  }
}

</mosaic_0001>

<llo_original>
// kernel: target_value_forward.1
$region0: #{target_value_forward.1}
  #allocation0 [shape = 'u32[]', space=smem, size = 0x4, offset = 0x4, fixed_abs, tag = 'smem constant byte address 0x4 - core index']
  #allocation1 [shape = 'u32[72,128]{1,0:T(1,128)}', space=vmem, size = 0x9000, scoped, tag = 'internal scratch']
  #allocation2 [shape = 'f32[1,1]{1,0:T(1,128)S(6)}', space=smem, size = 0x200, scoped, tag = 'scoped memory for target_value_forward.1']
  %s0 = inlined_call_operand.vmem [shape: f32[8,32], index: 0, kind: input, shape index: {}]
  %s1 = inlined_call_operand.hbm [shape: f32[8,32], index: 1, kind: input, shape index: {}]
  %s2 = inlined_call_operand.hbm [shape: f32[64,128], index: 2, kind: input, shape index: {}]
  %s3 = inlined_call_operand.vmem [shape: f32[1,128], index: 3, kind: input, shape index: {}]
  %s4 = inlined_call_operand.vmem [shape: f32[1,128], index: 4, kind: input, shape index: {}]
  %s5 = inlined_call_operand.<no memory space> [shape: f32[1,1], index: 5, kind: input, shape index: {}]
  %s6 = inlined_call_operand.vmem [shape: f32[8,1], index: 6, kind: input, shape index: {}]
  %s7 = inlined_call_operand.vmem [shape: f32[8,1], index: 7, kind: output, shape index: {0}]
  %s8 = inlined_call_operand.hbm [shape: f32[1,1], index: 8, kind: output, shape index: {1}]
  %9 = xla_tuple %s7, %s8
  %s10 = sld [smem:[#allocation0]]
  $region54: #{target_value_forward.1} parent=0
    _
  %s12 = ssub.s32 1, %s10
  %s13 = scalar_select 0, %s12, %s10
  %14 = sst [smem:[#allocation2]] %s5
  $region1: #{target_value_forward.1} parent=0
    #allocation3 [shape = 'u8[4096]{0}', space=vmem, size = 0x1000, scoped, tag = 'input window, operand 1, single buffered']
    #allocation4 [shape = 's32[1]{0}', space=sflag, size = 0x4, scoped, tag = 'scoped memory for target_value_forward.1']
    #allocation5 [shape = 's32[1]{0}', space=sflag, size = 0x4, scoped, tag = 'scoped memory for target_value_forward.1']
    #allocation6 [shape = 'u8[32768]{0}', space=vmem, size = 0x8000, scoped, tag = 'input window, operand 2, single buffered']
    #allocation7 [shape = 's32[1]{0}', space=sflag, size = 0x4, scoped, tag = 'scoped memory for target_value_forward.1']
    #allocation8 [shape = 'u8[512]{0}', space=smem, size = 0x200, scoped, tag = 'output window, operand 1, single buffered']
    %15 = vsyncpa [#allocation4], 0
    %16 = vsyncpa [#allocation7], 0
    %17 = vsyncpa [#allocation5], 0
    // Predicated region
    $region2: #{target_value_forward.1} parent=1 // pred_check
      _
    $region3: #{target_value_forward.1} parent=1 // pred_check_branch
      %19 = sbr.rel (0) target = $region5
    $region4: #{target_value_forward.1} parent=1 // pred_region
      _
    $region5: #{target_value_forward.1} parent=1 // pred_fallthru
      _
    // Predicated region
    $region6: #{target_value_forward.1} parent=1 // pred_check
      _
    $region7: #{target_value_forward.1} parent=1 // pred_check_branch
      %21 = sbr.rel (0) target = $region9
    $region8: #{target_value_forward.1} parent=1 // pred_region
      %23 = vsyncadd [#allocation4], 0
      %s25 = sshll.u32 %s1, 4
      %s26 = int_to_ptr.hbm [resolvable:$true] %s25
      %s27 = sshll.u32 [#allocation3], 4
      %s28 = int_to_ptr.vmem [resolvable:$true] %s27
      %30 = dma.hbm_to_vmem [thread:$0]  %s26, 128, %s28, [#allocation4]
    $region9: #{target_value_forward.1} parent=1 // pred_fallthru
      _
    // Predicated region
    $region10: #{target_value_forward.1} parent=1 // pred_check
      _
    $region11: #{target_value_forward.1} parent=1 // pred_check_branch
      %32 = sbr.rel (0) target = $region13
    $region12: #{target_value_forward.1} parent=1 // pred_region
      %34 = vsyncadd [#allocation7], 0
      %s35 = sshll.u32 %s2, 4
      %s36 = int_to_ptr.hbm [resolvable:$true] %s35
      %s37 = sshll.u32 [#allocation6], 4
      %s38 = int_to_ptr.vmem [resolvable:$true] %s37
      %43 = dma.hbm_to_vmem [thread:$0]  %s36, 1024, %s38, [#allocation7], 128, 128, 8
    $region13: #{target_value_forward.1} parent=1 // pred_fallthru
      _
    // Predicated region
    $region14: #{target_value_forward.1} parent=1 // pred_check
      _
    $region15: #{target_value_forward.1} parent=1 // pred_check_branch
      %45 = sbr.rel (0) target = $region17
    $region16: #{target_value_forward.1} parent=1 // pred_region
      _
    $region17: #{target_value_forward.1} parent=1 // pred_fallthru
      _
    // Predicated region
    $region18: #{target_value_forward.1} parent=1 // pred_check
      _
    $region19: #{target_value_forward.1} parent=1 // pred_check_branch
      %47 = sbr.rel (0) target = $region21
    $region20: #{target_value_forward.1} parent=1 // pred_region
      _
    $region21: #{target_value_forward.1} parent=1 // pred_fallthru
      _
    // Predicated region
    $region22: #{target_value_forward.1} parent=1 // pred_check
      _
    $region23: #{target_value_forward.1} parent=1 // pred_check_branch
      %49 = sbr.rel (0) target = $region25
    $region24: #{target_value_forward.1} parent=1 // pred_region
      _
    $region25: #{target_value_forward.1} parent=1 // pred_fallthru
      _
    // Predicated region
    $region26: #{target_value_forward.1} parent=1 // pred_check
      _
    $region27: #{target_value_forward.1} parent=1 // pred_check_branch
      %51 = sbr.rel (0) target = $region29
    $region28: #{target_value_forward.1} parent=1 // pred_region
      _
    $region29: #{target_value_forward.1} parent=1 // pred_fallthru
      _
    // Predicated region
    $region30: #{target_value_forward.1} parent=1 // pred_check
      _
    $region31: #{target_value_forward.1} parent=1 // pred_check_branch
      %53 = sbr.rel (0) target = $region33
    $region32: #{target_value_forward.1} parent=1 // pred_region
      %55 = dma.done [#allocation4], 128
    $region33: #{target_value_forward.1} parent=1 // pred_fallthru
      _
    // Predicated region
    $region34: #{target_value_forward.1} parent=1 // pred_check
      _
    $region35: #{target_value_forward.1} parent=1 // pred_check_branch
      %57 = sbr.rel (0) target = $region37
    $region36: #{target_value_forward.1} parent=1 // pred_region
      %59 = dma.done [#allocation7], 1024
    $region37: #{target_value_forward.1} parent=1 // pred_fallthru
      _
    %v60 = vld [vmem:[%s0] sm:$0xff]
    %v61 = vld [vmem:[#allocation6] sm:$0xff]
    %v62 = vld [vmem:[#allocation6 + $0x8] sm:$0xff]
    %v63 = vld [vmem:[#allocation6 + $0x10] sm:$0xff]
    %v64 = vld [vmem:[#allocation6 + $0x18] sm:$0xff]
    %v65 = vld [vmem:[#allocation3] sm:$0xff]
    %v66 = vld [vmem:[#allocation6 + $0x20] sm:$0xff]
    %v67 = vld [vmem:[#allocation6 + $0x28] sm:$0xff]
    %v68 = vld [vmem:[#allocation6 + $0x30] sm:$0xff]
    %v69 = vld [vmem:[#allocation6 + $0x38] sm:$0xff]
    %vm70 = vcmask 261120
    %v72 = vsel %vm70, %v65, 0
    %74 = vmatpush.msra.mxu0 0.0
    %75 = vmatpush.msra.mxu0 0.0
    %76 = vmatpush.msra.mxu0 0.0
    %77 = vmatpush.msra.mxu0 0.0
    %78 = vmatpush.msra.mxu0 0.0
    %79 = vmatpush.msra.mxu0 0.0
    %80 = vmatpush.msra.mxu0 0.0
    %81 = vmatpush.msra.mxu0 0.0
    %82 = vmatpush.msra.mxu0 0.0
    %83 = vmatpush.msra.mxu0 0.0
    %84 = vmatpush.msra.mxu0 0.0
    %85 = vmatpush.msra.mxu0 0.0
    %86 = vmatpush.msra.mxu0 %v69
    %87 = vmatpush.msra.mxu0 %v68
    %88 = vmatpush.msra.mxu0 %v67
    %89 = vmatpush.msra.mxu0 %v66
    %90 = vmatmul.f32.gmra.mxu0 %v72
    %v91 = vpop.f32.mrf.mxu0
    %v92 = vadd.f32 0.0, %v91
    %93 = vdwg.mxu0
    %v95 = vsel %vm70, %v60, 0
    %97 = vmatpush.msra.mxu0 0.0
    %98 = vmatpush.msra.mxu0 0.0
    %99 = vmatpush.msra.mxu0 0.0
    %100 = vmatpush.msra.mxu0 0.0
    %101 = vmatpush.msra.mxu0 0.0
    %102 = vmatpush.msra.mxu0 0.0
    %103 = vmatpush.msra.mxu0 0.0
    %104 = vmatpush.msra.mxu0 0.0
    %105 = vmatpush.msra.mxu0 0.0
    %106 = vmatpush.msra.mxu0 0.0
    %107 = vmatpush.msra.mxu0 0.0
    %108 = vmatpush.msra.mxu0 0.0
    %109 = vmatpush.msra.mxu0 %v64
    %110 = vmatpush.msra.mxu0 %v63
    %111 = vmatpush.msra.mxu0 %v62
    %112 = vmatpush.msra.mxu0 %v61
    %113 = vmatmul.f32.gmra.mxu0 %v95
    %v114 = vpop.f32.mrf.mxu0
    %v115 = vadd.f32 %v92, %v114
    %116 = vdwg.mxu0
    %v117 = vld [vmem:[%s3] sm:$0x1]
    %v119 = vperm.slane %v117, 0
    %v121 = vadd.f32 %v115, %v119
    %v122 = vld [vmem:[%s4] sm:$0x1]
    %v124 = vperm.slane %v122, 0
    %v126 = vmul.f32 %v121, %v124
    %127 = vadd.xlane.f32.xlu0 %v126
    %v128 = vpop.xlane.xlu0 %127
    %s129 = sld [smem:[#allocation2]]
    %v130 = vstv %s129
    %v131 = vadd.f32 %v128, %v130
    %vm132 = vcmask 7168
    %133 = vst.msk [vmem:[%s7] sm:$0xff] %vm132, %v131
    %v134 = vld [vmem:[%s6] sm:$0xff]
    %v135 = vsub.f32 %v131, %v134
    %v136 = vmul.f32 %v135, %v135
    %v137 = vsel %vm132, %v136, 0.0
    %138 = vadd.xlane.f32.xlu0 %v137
    %v139 = vpop.xlane.xlu0 %138
    %v140 = vrot.slane %v139, 4
    %v141 = vadd.f32 %v139, %v140
    %v142 = vrot.slane %v141, 2
    %v143 = vadd.f32 %v141, %v142
    %v144 = vrot.slane %v143, 1
    %v145 = vadd.f32 %v143, %v144
    %s146 = vtos %v145
    %v147 = vrcp.pop 8.0
    %v148 = vmul.f32 8.0, %v147
    %v149 = vsub.f32 1.0, %v148
    %v150 = vmul.f32 %v147, %v149
    %v151 = vadd.f32 %v147, %v150
    %vm152 = vweird.f32 %v147
    %v153 = vsel %vm152, %v147, %v151
    %s154 = vtos %v153
    %s155 = smul.f32 %s146, %s154
    %v156 = vstv %s155
    %v157 = vrsqrt.pop %v156
    %v158 = vmul.f32 %v157, %v156
    %v159 = vmul.f32 %v158, %v157
    %v160 = vmul.f32 0.5, %v159
    %v161 = vsub.f32 1.5, %v160
    %v162 = vmul.f32 %v157, %v161
    %v163 = vmul.f32 %v156, %v162
    %vm164 = vcmp.eq.f32.partialorder %v156, inf
    %v165 = vsel %vm164, %v156, %v163
    %vm166 = vcmp.eq.f32.partialorder %v156, 0.0
    %v167 = vand.u32 %v156, 2147483648
    %v168 = vsel %vm166, %v167, %v165
    %s169 = vtos %v168
    %s170 = scalar_lea.smem [#allocation8], 0
    %171 = sst [smem:[%s170]] %s169
    // Predicated region
    $region38: #{target_value_forward.1} parent=1 // pred_check
      _
    $region39: #{target_value_forward.1} parent=1 // pred_check_branch
      %173 = sbr.rel (0) target = $region41
    $region40: #{target_value_forward.1} parent=1 // pred_region
      _
    $region41: #{target_value_forward.1} parent=1 // pred_fallthru
      _
    // Predicated region
    $region42: #{target_value_forward.1} parent=1 // pred_check
      _
    $region43: #{target_value_forward.1} parent=1 // pred_check_branch
      %175 = sbr.rel (0) target = $region45
    $region44: #{target_value_forward.1} parent=1 // pred_region
      %177 = vsyncadd [#allocation5], 0
      %s179 = sshll.u32 %s8, 4
      %s180 = int_to_ptr.hbm [resolvable:$true] %s179
      %182 = dma.smem_to_hbm [#allocation8], 16, %s180, [#allocation5]
    $region45: #{target_value_forward.1} parent=1 // pred_fallthru
      _
    // Predicated region
    $region46: #{target_value_forward.1} parent=1 // pred_check
      _
    $region47: #{target_value_forward.1} parent=1 // pred_check_branch
      %184 = sbr.rel (0) target = $region49
    $region48: #{target_value_forward.1} parent=1 // pred_region
      _
    $region49: #{target_value_forward.1} parent=1 // pred_fallthru
      _
    // Predicated region
    $region50: #{target_value_forward.1} parent=1 // pred_check
      _
    $region51: #{target_value_forward.1} parent=1 // pred_check_branch
      %186 = sbr.rel (0) target = $region53
    $region52: #{target_value_forward.1} parent=1 // pred_region
      %188 = dma.done [#allocation5], 16
    $region53: #{target_value_forward.1} parent=1 // pred_fallthru
      _
    %189 = sfence
    %190 = vsyncpa [#allocation4], 1
    %191 = vsyncpa [#allocation7], 1
    %192 = vsyncpa [#allocation5], 1

</llo_original>
